<compile_context>
chip_gen: v7x
topology: tpu7x:2x2x1
jax: 0.10.0
libtpu: 0.0.40
codegen_flags: <defaults>
</compile_context>

<pallas_src>
import functools

import numpy as np
import jax
import jax.numpy as jnp
from jax.experimental import pallas as pl
from jax.experimental.pallas import tpu as pltpu

LANE = 128


def _round_up(v, m):
    return (v + m - 1) // m * m


def _pick_row_tile(n_pad):
    for cand in (512, 256, 128):
        if n_pad % cand == 0:
            return cand
    return n_pad


# ---------------------------------------------------------------------------
# Kernel 1: node-feature transform  t = X @ W1   (bf16 operands, f32 acc)
# ---------------------------------------------------------------------------
def _xw_kernel(x_ref, w_ref, t_ref):
    t = jnp.dot(x_ref[...], w_ref[...], preferred_element_type=jnp.float32)
    t_ref[...] = t.astype(t_ref.dtype)


def _feature_transform(x_bf16, w1_bf16, *, tm):
    n, fin = x_bf16.shape
    hpad = w1_bf16.shape[1]
    return pl.pallas_call(
        _xw_kernel,
        out_shape=jax.ShapeDtypeStruct((n, hpad), jnp.bfloat16),
        grid_spec=pltpu.PrefetchScalarGridSpec(
            num_scalar_prefetch=0,
            grid=(n // tm,),
            in_specs=[
                pl.BlockSpec((tm, fin), lambda i: (i, 0)),
                pl.BlockSpec((fin, hpad), lambda i: (0, 0)),
            ],
            out_specs=pl.BlockSpec((tm, hpad), lambda i: (i, 0)),
        ),
        compiler_params=pltpu.CompilerParams(
            dimension_semantics=("parallel",),
            vmem_limit_bytes=32 * 1024 * 1024,
        ),
        cost_estimate=pl.CostEstimate(
            flops=2 * n * fin * hpad,
            transcendentals=0,
            bytes_accessed=2 * (n * fin + fin * hpad + n * hpad),
        ),
    )(x_bf16, w1_bf16)


# ---------------------------------------------------------------------------
# Kernel 2: conv1 aggregation (A @ t) + bias + ReLU + fused (P @ A) pooling.
#           Grid = (row tiles i [parallel], col tiles k [reduction]).
#           Emits a per-row-tile pooled partial r_i = (P@A)[:, i-tile] @ h_i.
# ---------------------------------------------------------------------------
def _agg_pool_kernel(a_ref, t_ref, pa_ref, b1_ref, o_ref, acc_h, *, tk):
    k = pl.program_id(1)
    nk = pl.num_programs(1)

    @pl.when(k == 0)
    def _():
        acc_h[...] = jnp.zeros_like(acc_h)

    # Inner loop: one bf16 MXU matmul per step, f32 accumulation.
    # t is fully VMEM-resident; slice the k-th column tile in-kernel.
    start = pl.multiple_of(k * tk, tk)
    t_blk = t_ref[pl.ds(start, tk), :]                               # [tk, Hpad]
    acc_h[...] += jnp.dot(a_ref[...], t_blk,
                          preferred_element_type=jnp.float32)

    @pl.when(k == nk - 1)
    def _():
        # conv1 finalize: bias + ReLU in f32, once per row tile.
        h = jnp.maximum(acc_h[...] + b1_ref[...], 0.0)               # [tm, Hpad]
        # F.dropout(training=False) -> identity (eval-mode forward).
        # TODO(synk): training-mode dropout (p=0.5) would need pltpu.prng_* masking.
        # pooled partial (W2/b2/log_softmax applied once in the epilogue):
        r = jnp.dot(pa_ref[...], h.astype(jnp.bfloat16),
                    preferred_element_type=jnp.float32)              # [G, Hpad]
        o_ref[...] = r[None, :, :]


# ---------------------------------------------------------------------------
# Kernel 3 (epilogue, single block): logits = pooled @ W2 + b2 -> log_softmax
# ---------------------------------------------------------------------------
def _head_kernel(p_ref, w2_ref, b2_ref, o_ref, *, num_classes):
    logits = jnp.dot(p_ref[...].astype(jnp.bfloat16), w2_ref[...],
                     preferred_element_type=jnp.float32) + b2_ref[...]  # [G, Cpad]
    lane = jax.lax.broadcasted_iota(jnp.int32, logits.shape, 1)
    logits = jnp.where(lane < num_classes, logits, -1e30)
    m = jnp.max(logits, axis=1, keepdims=True)
    z = logits - m
    lse = jnp.log(jnp.sum(jnp.exp(z), axis=1, keepdims=True))
    o_ref[...] = z - lse


# ---------------------------------------------------------------------------
# Full forward (wrapper + plain-JAX glue)
# ---------------------------------------------------------------------------
def gcn_classifier_forward(x, edge_index, batch, w1, b1, w2, b2, num_graphs,
                           *, tm=256, tk=256):
    """Eval-mode forward of GCNClassifier as Pallas TPU kernels."""
    n, fin = x.shape
    hdim = w1.shape[1]
    c = w2.shape[1]
    g = num_graphs

    # --- glue: normalized adjacency, pooling matrix, P@A fold, padding -------
    a_hat = build_norm_adj(edge_index, n)                 # [N, N]
    pool = build_pool_matrix(batch, g)                    # [G, N]
    pa = pool @ a_hat                                     # [G, N]  (P @ A fold)

    n_pad = _round_up(n, int(np.lcm(tm, tk)))
    hpad = _round_up(hdim, LANE)
    cpad = _round_up(c, LANE)

    # Padded nodes are isolated (zero A rows/cols) and have zero pooling
    # weight in PA, so they never affect the pooled result.
    a_p = jnp.zeros((n_pad, n_pad), jnp.float32).at[:n, :n].set(a_hat)
    x_p = jnp.zeros((n_pad, fin), jnp.float32).at[:n, :].set(x)
    pa_p = jnp.zeros((g, n_pad), jnp.float32).at[:, :n].set(pa)
    w1_p = jnp.zeros((fin, hpad), jnp.float32).at[:, :hdim].set(w1)
    b1_p = jnp.zeros((1, hpad), jnp.float32).at[:, :hdim].set(b1.reshape(1, -1))
    w2_p = jnp.zeros((hpad, cpad), jnp.float32).at[:hdim, :c].set(w2)
    b2_p = jnp.zeros((1, cpad), jnp.float32).at[:, :c].set(b2.reshape(1, -1))

    # --- kernel 1: t = X @ W1 (enlarged row tile to cut per-step overhead) ---
    tm1 = _pick_row_tile(n_pad)
    t = _feature_transform(x_p.astype(jnp.bfloat16),
                           w1_p.astype(jnp.bfloat16), tm=tm1)

    # --- kernel 2: aggregation + ReLU + fused pooling partials ---------------
    ni, nk = n_pad // tm, n_pad // tk
    kernel = functools.partial(_agg_pool_kernel, tk=tk)
    r_part = pl.pallas_call(
        kernel,
        out_shape=jax.ShapeDtypeStruct((ni, g, hpad), jnp.float32),
        grid_spec=pltpu.PrefetchScalarGridSpec(
            num_scalar_prefetch=0,
            grid=(ni, nk),
            in_specs=[
                pl.BlockSpec((tm, tk), lambda i, k: (i, k)),       # A_hat tile
                pl.BlockSpec((n_pad, hpad), lambda i, k: (0, 0)),  # t (resident)
                pl.BlockSpec((g, tm), lambda i, k: (0, i)),        # PA columns
                pl.BlockSpec((1, hpad), lambda i, k: (0, 0)),      # b1
            ],
            out_specs=pl.BlockSpec((1, g, hpad), lambda i, k: (i, 0, 0)),
            scratch_shapes=[
                pltpu.VMEM((tm, hpad), jnp.float32),   # conv1 row-tile accum
            ],
        ),
        compiler_params=pltpu.CompilerParams(
            # Pooled partials are per-row-tile outputs, so the row axis is
            # independent and can be split across TensorCores (v7x megacore).
            dimension_semantics=("parallel", "arbitrary"),
            vmem_limit_bytes=32 * 1024 * 1024,
        ),
        cost_estimate=pl.CostEstimate(
            flops=2 * (n_pad * n_pad * hpad + g * n_pad * hpad),
            transcendentals=0,
            bytes_accessed=(2 * (n_pad * n_pad + n_pad * hpad + g * n_pad)
                            + 4 * (hpad + ni * g * hpad)),
        ),
    )(a_p.astype(jnp.bfloat16), t, pa_p.astype(jnp.bfloat16), b1_p)

    # --- tiny epilogue: sum row-tile partials, apply W2 + b2 + log_softmax ---
    pooled = jnp.sum(r_part, axis=0)                                  # [G, Hpad]
    head = functools.partial(_head_kernel, num_classes=c)
    out_pad = pl.pallas_call(
        head,
        out_shape=jax.ShapeDtypeStruct((g, cpad), jnp.float32),
        cost_estimate=pl.CostEstimate(
            flops=2 * g * hpad * cpad,
            transcendentals=g * cpad,
            bytes_accessed=4 * (g * hpad + cpad + g * cpad) + 2 * hpad * cpad,
        ),
    )(pooled, w2_p.astype(jnp.bfloat16), b2_p)

    return out_pad[:, :c]


# ------------------------- plain-JAX glue ------------------------------------
def build_norm_adj(edge_index, num_nodes):
    """Dense D^-1/2 (A + I) D^-1/2 with A[dst, src] = 1 per edge (PyG default)."""
    src, dst = edge_index[0], edge_index[1]
    a = jnp.zeros((num_nodes, num_nodes), jnp.float32)
    a = a.at[dst, src].add(1.0)
    a = a + jnp.eye(num_nodes, dtype=jnp.float32)
    deg = jnp.sum(a, axis=1)
    dinv = jnp.where(deg > 0, 1.0 / jnp.sqrt(deg), 0.0)
    return dinv[:, None] * a * dinv[None, :]


def build_pool_matrix(batch, num_graphs):
    """P[g, n] = 1/count(g) if batch[n] == g."""
    onehot = (batch[None, :] == jnp.arange(num_graphs)[:, None]).astype(jnp.float32)
    counts = jnp.maximum(jnp.sum(onehot, axis=1, keepdims=True), 1.0)
    return onehot / counts


def glorot(key, shape):
    limit = float(np.sqrt(6.0 / (shape[0] + shape[1])))
    return jax.random.uniform(key, shape, jnp.float32, -limit, limit)


if __name__ == "__main__":
    # Module defaults: in_dim=768, hidden_dim=128, out_dim=2; small graph batch.
    IN_DIM, HIDDEN, OUT_DIM = 768, 128, 2
    NUM_GRAPHS, NODES_PER_GRAPH = 4, 64
    N = NUM_GRAPHS * NODES_PER_GRAPH                      # 256 nodes

    key = jax.random.PRNGKey(0)
    k_x, k_w1, k_w2, k_b1, k_b2 = jax.random.split(key, 5)

    x = jax.random.normal(k_x, (N, IN_DIM), jnp.float32)
    batch = jnp.repeat(jnp.arange(NUM_GRAPHS, dtype=jnp.int32), NODES_PER_GRAPH)

    # bidirectional ring edges within each graph
    src_list, dst_list = [], []
    for gidx in range(NUM_GRAPHS):
        base = gidx * NODES_PER_GRAPH
        for i in range(NODES_PER_GRAPH):
            s, d = base + i, base + (i + 1) % NODES_PER_GRAPH
            src_list += [s, d]
            dst_list += [d, s]
    edge_index = jnp.array([src_list, dst_list], jnp.int32)   # [2, 512]

    w1 = glorot(k_w1, (IN_DIM, HIDDEN))
    w2 = glorot(k_w2, (HIDDEN, OUT_DIM))
    b1 = 0.1 * jax.random.normal(k_b1, (HIDDEN,), jnp.float32)
    b2 = 0.1 * jax.random.normal(k_b2, (OUT_DIM,), jnp.float32)

    # ---- references ----------------------------------------------------------
    a_hat = build_norm_adj(edge_index, N)
    pool = build_pool_matrix(batch, NUM_GRAPHS)

    # (1) tight reference: f32 math over bf16-rounded operands, matching the
    #     kernel dtype flow (t stored bf16, h cast bf16 for pooling, pooled
    #     cast bf16 for the W2 head).
    rnd = lambda v: v.astype(jnp.bfloat16).astype(jnp.float32)
    t_b = rnd(rnd(x) @ rnd(w1))
    h_b = jnp.maximum(rnd(a_hat) @ t_b + b1[None, :], 0.0)
    pooled_b = rnd(pool @ a_hat) @ rnd(h_b)
    logits_b = rnd(pooled_b) @ rnd(w2) + b2[None, :]
    ref_bf16 = jax.nn.log_softmax(logits_b, axis=1)

    # (2) loose pure-f32 reference
    h = jnp.maximum(a_hat @ (x @ w1) + b1[None, :], 0.0)
    h2 = a_hat @ (h @ w2) + b2[None, :]
    ref_f32 = jax.nn.log_softmax(pool @ h2, axis=1)

    # Run at 128 tiles (exercises the multi-tile, parallel-i path: 2x2 grid)
    # and at the 256-tile default (MXU-filling on v6e/v7x, 1x1 grid here).
    for tile in (128, 256):
        out = gcn_classifier_forward(x, edge_index, batch, w1, b1, w2, b2,
                                     NUM_GRAPHS, tm=tile, tk=tile)
        out = jax.block_until_ready(out)
        assert out.shape == (NUM_GRAPHS, OUT_DIM)
        assert np.allclose(np.asarray(out), np.asarray(ref_bf16), atol=3e-3), \
            f"mismatch vs bf16-operand reference (tile={tile})"
        assert np.allclose(np.asarray(out), np.asarray(ref_f32), atol=1e-1), \
            f"mismatch vs f32 reference (tile={tile})"

    print("KERNEL_OK")
</pallas_src>

<mosaic_0001>
module attributes {stable_mosaic.version = 11 : i64} {
  func.func @_xw_kernel(%arg0: i32, %arg1: memref<256x768xbf16, #tpu.memory_space<vmem>>, %arg2: memref<768x128xbf16, #tpu.memory_space<vmem>>, %arg3: memref<256x128xbf16, #tpu.memory_space<vmem>>) attributes {dimension_semantics = [#tpu.dimension_semantics<parallel>], iteration_bounds = array<i64: 1>, scalar_prefetch = 0 : i64, scratch_operands = 0 : i64, tpu.core_type = #tpu.core_type<tc>, window_params = [{transform_indices = @transform_0, window_bounds = array<i64: 256, 768>}, {pipeline_mode = #tpu.pipeline_mode<synchronous>, transform_indices = @transform_1, window_bounds = array<i64: 768, 128>}, {transform_indices = @transform_2, window_bounds = array<i64: 256, 128>}]} {
    %c0 = arith.constant 0 : index
    %c0_0 = arith.constant 0 : index
    %0 = vector.load %arg1[%c0, %c0_0] : memref<256x768xbf16, #tpu.memory_space<vmem>>, vector<256x768xbf16>
    %c0_1 = arith.constant 0 : index
    %c0_2 = arith.constant 0 : index
    %1 = vector.load %arg2[%c0_1, %c0_2] : memref<768x128xbf16, #tpu.memory_space<vmem>>, vector<768x128xbf16>
    %cst = arith.constant dense<0.000000e+00> : vector<256x128xf32>
    %2 = tpu.matmul %0, %1, %cst {dimension_numbers = #tpu.dot_dimension_numbers<[1], [0], [0], [1], [0, 0, 1, 1], [], []>} : vector<256x768xbf16>, vector<768x128xbf16>, vector<256x128xf32> -> vector<256x128xf32>
    %3 = arith.truncf %2 : vector<256x128xf32> to vector<256x128xbf16>
    %c0_3 = arith.constant 0 : index
    %c0_4 = arith.constant 0 : index
    %4 = vector.load %arg3[%c0_3, %c0_4] : memref<256x128xbf16, #tpu.memory_space<vmem>>, vector<256x128xbf16>
    tpu.vector_store %arg3[%c0_3, %c0_4], %3 {strides = array<i32>} : memref<256x128xbf16, #tpu.memory_space<vmem>>, vector<256x128xbf16>,
    return
  }
  func.func @transform_0(%arg0: i32) -> (i32, i32) {
    %c0_i32 = arith.constant 0 : i32
    %c0_i32_0 = arith.constant 0 : i32
    return %arg0, %c0_i32 : i32, i32
  }
  func.func @transform_1(%arg0: i32) -> (i32, i32) {
    %c0_i32 = arith.constant 0 : i32
    %c0_i32_0 = arith.constant 0 : i32
    %c0_i32_1 = arith.constant 0 : i32
    return %c0_i32, %c0_i32_0 : i32, i32
  }
  func.func @transform_2(%arg0: i32) -> (i32, i32) {
    %c0_i32 = arith.constant 0 : i32
    %c0_i32_0 = arith.constant 0 : i32
    return %arg0, %c0_i32 : i32, i32
  }
}

</mosaic_0001>

<llo_original>
// kernel: tpu_custom_call.1
$region0: #{tpu_custom_call.1}
  #allocation0 [shape = 'u32[]', space=smem, size = 0x4, offset = 0x4, fixed_abs, tag = 'smem constant byte address 0x4 - core index']
  #allocation1 [shape = 'u32[144,128]{1,0:T(1,128)}', space=vmem, size = 0x12000, scoped, tag = 'internal scratch']
  %s0 = inlined_call_operand.hbm [shape: bf16[256,768], index: 0, kind: input, shape index: {}]
  %s1 = inlined_call_operand.hbm [shape: bf16[768,128], index: 1, kind: input, shape index: {}]
  %s2 = inlined_call_operand.hbm [shape: bf16[256,128], index: 2, kind: output, shape index: {}]
  %s3 = sld [smem:[#allocation0]]
  $region26: #{tpu_custom_call.1} parent=0
    _
  %s5 = ssub.s32 1, %s3
  %s6 = scalar_select 0, %s5, %s3
  $region1: #{tpu_custom_call.1} parent=0
    #allocation2 [shape = 'u8[393216]{0}', space=vmem, size = 0x60000, scoped, tag = 'input window, operand 0, single buffered']
    #allocation3 [shape = 's32[1]{0}', space=sflag, size = 0x4, scoped, tag = 'scoped memory for tpu_custom_call.1']
    #allocation4 [shape = 's32[1]{0}', space=sflag, size = 0x4, scoped, tag = 'scoped memory for tpu_custom_call.1']
    #allocation5 [shape = 'u8[196608]{0}', space=vmem, size = 0x30000, scoped, tag = 'input window, operand 1, single buffered']
    #allocation6 [shape = 's32[1]{0}', space=sflag, size = 0x4, scoped, tag = 'scoped memory for tpu_custom_call.1']
    #allocation7 [shape = 'u8[65536]{0}', space=vmem, size = 0x10000, scoped, tag = 'output window, operand 0, single buffered']
    %7 = vsyncpa [#allocation3], 0
    %8 = vsyncpa [#allocation6], 0
    %9 = vsyncpa [#allocation4], 0
    // Predicated region
    $region2: #{tpu_custom_call.1} parent=1 // pred_check
      _
    $region3: #{tpu_custom_call.1} parent=1 // pred_check_branch
      %11 = sbr.rel (0) target = $region5
    $region4: #{tpu_custom_call.1} parent=1 // pred_region
      %s13 = ssub.s32 12288, 12288
      %14 = vsyncadd [#allocation3], %s13
      %s15 = sshll.u32 [#allocation2], 4
      %s16 = int_to_ptr.vmem [resolvable:$true] %s15
      %21 = dma.hbm_to_vmem [thread:$0]  %s0, 12288, %s16, [#allocation3], 384, 384, 24
    $region5: #{tpu_custom_call.1} parent=1 // pred_fallthru
      _
    // Predicated region
    $region6: #{tpu_custom_call.1} parent=1 // pred_check
      _
    $region7: #{tpu_custom_call.1} parent=1 // pred_check_branch
      %23 = sbr.rel (0) target = $region9
    $region8: #{tpu_custom_call.1} parent=1 // pred_region
      %s25 = ssub.s32 6144, 6144
      %26 = vsyncadd [#allocation6], %s25
      %s27 = sshll.u32 [#allocation5], 4
      %s28 = int_to_ptr.vmem [resolvable:$true] %s27
      %33 = dma.hbm_to_vmem [thread:$0]  %s1, 6144, %s28, [#allocation6], 64, 64, 4
    $region9: #{tpu_custom_call.1} parent=1 // pred_fallthru
      _
    // Predicated region
    $region10: #{tpu_custom_call.1} parent=1 // pred_check
      _
    $region11: #{tpu_custom_call.1} parent=1 // pred_check_branch
      %35 = sbr.rel (0) target = $region13
    $region12: #{tpu_custom_call.1} parent=1 // pred_region
      %36 = dma.done [#allocation3], 12288
    $region13: #{tpu_custom_call.1} parent=1 // pred_fallthru
      _
    // Predicated region
    $region14: #{tpu_custom_call.1} parent=1 // pred_check
      _
    $region15: #{tpu_custom_call.1} parent=1 // pred_check_branch
      %38 = sbr.rel (0) target = $region17
    $region16: #{tpu_custom_call.1} parent=1 // pred_region
      %39 = dma.done [#allocation6], 6144
    $region17: #{tpu_custom_call.1} parent=1 // pred_fallthru
      _
    %v41 = vld [vmem:[#allocation2] sm:$0xff]
    %v42 = vld [vmem:[#allocation2 + $0x8] sm:$0xff]
    %v43 = vld [vmem:[#allocation2 + $0x10] sm:$0xff]
    %v44 = vld [vmem:[#allocation2 + $0x18] sm:$0xff]
    %v45 = vld [vmem:[#allocation2 + $0x20] sm:$0xff]
    %v46 = vld [vmem:[#allocation2 + $0x28] sm:$0xff]
    %v47 = vld [vmem:[#allocation2 + $0x30] sm:$0xff]
    %v48 = vld [vmem:[#allocation2 + $0x38] sm:$0xff]
    %v49 = vld [vmem:[#allocation2 + $0x40] sm:$0xff]
    %v50 = vld [vmem:[#allocation2 + $0x48] sm:$0xff]
    %v51 = vld [vmem:[#allocation2 + $0x50] sm:$0xff]
    %v52 = vld [vmem:[#allocation2 + $0x58] sm:$0xff]
    %v53 = vld [vmem:[#allocation2 + $0x60] sm:$0xff]
    %v54 = vld [vmem:[#allocation2 + $0x68] sm:$0xff]
    %v55 = vld [vmem:[#allocation2 + $0x70] sm:$0xff]
    %v56 = vld [vmem:[#allocation2 + $0x78] sm:$0xff]
    %v57 = vld [vmem:[#allocation2 + $0x80] sm:$0xff]
    %v58 = vld [vmem:[#allocation2 + $0x88] sm:$0xff]
    %v59 = vld [vmem:[#allocation2 + $0x90] sm:$0xff]
    %v60 = vld [vmem:[#allocation2 + $0x98] sm:$0xff]
    %v61 = vld [vmem:[#allocation2 + $0xa0] sm:$0xff]
    %v62 = vld [vmem:[#allocation2 + $0xa8] sm:$0xff]
    %v63 = vld [vmem:[#allocation2 + $0xb0] sm:$0xff]
    %v64 = vld [vmem:[#allocation2 + $0xb8] sm:$0xff]
    %v65 = vld [vmem:[#allocation2 + $0xc0] sm:$0xff]
    %v66 = vld [vmem:[#allocation2 + $0xc8] sm:$0xff]
    %v67 = vld [vmem:[#allocation2 + $0xd0] sm:$0xff]
    %v68 = vld [vmem:[#allocation2 + $0xd8] sm:$0xff]
    %v69 = vld [vmem:[#allocation2 + $0xe0] sm:$0xff]
    %v70 = vld [vmem:[#allocation2 + $0xe8] sm:$0xff]
    %v71 = vld [vmem:[#allocation2 + $0xf0] sm:$0xff]
    %v72 = vld [vmem:[#allocation2 + $0xf8] sm:$0xff]
    %v73 = vld [vmem:[#allocation2 + $0x100] sm:$0xff]
    %v74 = vld [vmem:[#allocation2 + $0x108] sm:$0xff]
    %v75 = vld [vmem:[#allocation2 + $0x110] sm:$0xff]
    %v76 = vld [vmem:[#allocation2 + $0x118] sm:$0xff]
    %v77 = vld [vmem:[#allocation2 + $0x120] sm:$0xff]
    %v78 = vld [vmem:[#allocation2 + $0x128] sm:$0xff]
    %v79 = vld [vmem:[#allocation2 + $0x130] sm:$0xff]
    %v80 = vld [vmem:[#allocation2 + $0x138] sm:$0xff]
    %v81 = vld [vmem:[#allocation2 + $0x140] sm:$0xff]
    %v82 = vld [vmem:[#allocation2 + $0x148] sm:$0xff]
    %v83 = vld [vmem:[#allocation2 + $0x150] sm:$0xff]
    %v84 = vld [vmem:[#allocation2 + $0x158] sm:$0xff]
    %v85 = vld [vmem:[#allocation2 + $0x160] sm:$0xff]
    %v86 = vld [vmem:[#allocation2 + $0x168] sm:$0xff]
    %v87 = vld [vmem:[#allocation2 + $0x170] sm:$0xff]
    %v88 = vld [vmem:[#allocation2 + $0x178] sm:$0xff]
    %v89 = vld [vmem:[#allocation2 + $0x180] sm:$0xff]
    %v90 = vld [vmem:[#allocation2 + $0x188] sm:$0xff]
    %v91 = vld [vmem:[#allocation2 + $0x190] sm:$0xff]
    %v92 = vld [vmem:[#allocation2 + $0x198] sm:$0xff]
    %v93 = vld [vmem:[#allocation2 + $0x1a0] sm:$0xff]
    %v94 = vld [vmem:[#allocation2 + $0x1a8] sm:$0xff]
    %v95 = vld [vmem:[#allocation2 + $0x1b0] sm:$0xff]
    %v96 = vld [vmem:[#allocation2 + $0x1b8] sm:$0xff]
    %v97 = vld [vmem:[#allocation2 + $0x1c0] sm:$0xff]
    %v98 = vld [vmem:[#allocation2 + $0x1c8] sm:$0xff]
    %v99 = vld [vmem:[#allocation2 + $0x1d0] sm:$0xff]
    %v100 = vld [vmem:[#allocation2 + $0x1d8] sm:$0xff]
    %v101 = vld [vmem:[#allocation2 + $0x1e0] sm:$0xff]
    %v102 = vld [vmem:[#allocation2 + $0x1e8] sm:$0xff]
    %v103 = vld [vmem:[#allocation2 + $0x1f0] sm:$0xff]
    %v104 = vld [vmem:[#allocation2 + $0x1f8] sm:$0xff]
    %v105 = vld [vmem:[#allocation2 + $0x200] sm:$0xff]
    %v106 = vld [vmem:[#allocation2 + $0x208] sm:$0xff]
    %v107 = vld [vmem:[#allocation2 + $0x210] sm:$0xff]
    %v108 = vld [vmem:[#allocation2 + $0x218] sm:$0xff]
    %v109 = vld [vmem:[#allocation2 + $0x220] sm:$0xff]
    %v110 = vld [vmem:[#allocation2 + $0x228] sm:$0xff]
    %v111 = vld [vmem:[#allocation2 + $0x230] sm:$0xff]
    %v112 = vld [vmem:[#allocation2 + $0x238] sm:$0xff]
    %v113 = vld [vmem:[#allocation2 + $0x240] sm:$0xff]
    %v114 = vld [vmem:[#allocation2 + $0x248] sm:$0xff]
    %v115 = vld [vmem:[#allocation2 + $0x250] sm:$0xff]
    %v116 = vld [vmem:[#allocation2 + $0x258] sm:$0xff]
    %v117 = vld [vmem:[#allocation2 + $0x260] sm:$0xff]
    %v118 = vld [vmem:[#allocation2 + $0x268] sm:$0xff]
    %v119 = vld [vmem:[#allocation2 + $0x270] sm:$0xff]
    %v120 = vld [vmem:[#allocation2 + $0x278] sm:$0xff]
    %v121 = vld [vmem:[#allocation2 + $0x280] sm:$0xff]
    %v122 = vld [vmem:[#allocation2 + $0x288] sm:$0xff]
    %v123 = vld [vmem:[#allocation2 + $0x290] sm:$0xff]
    %v124 = vld [vmem:[#allocation2 + $0x298] sm:$0xff]
    %v125 = vld [vmem:[#allocation2 + $0x2a0] sm:$0xff]
    %v126 = vld [vmem:[#allocation2 + $0x2a8] sm:$0xff]
    %v127 = vld [vmem:[#allocation2 + $0x2b0] sm:$0xff]
    %v128 = vld [vmem:[#allocation2 + $0x2b8] sm:$0xff]
    %v129 = vld [vmem:[#allocation2 + $0x2c0] sm:$0xff]
    %v130 = vld [vmem:[#allocation2 + $0x2c8] sm:$0xff]
    %v131 = vld [vmem:[#allocation2 + $0x2d0] sm:$0xff]
    %v132 = vld [vmem:[#allocation2 + $0x2d8] sm:$0xff]
    %v133 = vld [vmem:[#allocation2 + $0x2e0] sm:$0xff]
    %v134 = vld [vmem:[#allocation2 + $0x2e8] sm:$0xff]
    %v135 = vld [vmem:[#allocation2 + $0x2f0] sm:$0xff]
    %v136 = vld [vmem:[#allocation2 + $0x2f8] sm:$0xff]
    %v137 = vld [vmem:[#allocation5] sm:$0xf]
    %v138 = vld [vmem:[#allocation5 + $0x4] sm:$0xf]
    %v139 = vld [vmem:[#allocation5 + $0x8] sm:$0xf]
    %v140 = vld [vmem:[#allocation5 + $0xc] sm:$0xf]
    %v141 = vld [vmem:[#allocation5 + $0x10] sm:$0xf]
    %v142 = vld [vmem:[#allocation5 + $0x14] sm:$0xf]
    %v143 = vld [vmem:[#allocation5 + $0x18] sm:$0xf]
    %v144 = vld [vmem:[#allocation5 + $0x1c] sm:$0xf]
    %v145 = vld [vmem:[#allocation5 + $0x20] sm:$0xf]
    %v146 = vld [vmem:[#allocation5 + $0x24] sm:$0xf]
    %v147 = vld [vmem:[#allocation5 + $0x28] sm:$0xf]
    %v148 = vld [vmem:[#allocation5 + $0x2c] sm:$0xf]
    %v149 = vld [vmem:[#allocation5 + $0x30] sm:$0xf]
    %v150 = vld [vmem:[#allocation5 + $0x34] sm:$0xf]
    %v151 = vld [vmem:[#allocation5 + $0x38] sm:$0xf]
    %v152 = vld [vmem:[#allocation5 + $0x3c] sm:$0xf]
    %v153 = vld [vmem:[#allocation5 + $0x40] sm:$0xf]
    %v154 = vld [vmem:[#allocation5 + $0x44] sm:$0xf]
    %v155 = vld [vmem:[#allocation5 + $0x48] sm:$0xf]
    %v156 = vld [vmem:[#allocation5 + $0x4c] sm:$0xf]
    %v157 = vld [vmem:[#allocation5 + $0x50] sm:$0xf]
    %v158 = vld [vmem:[#allocation5 + $0x54] sm:$0xf]
    %v159 = vld [vmem:[#allocation5 + $0x58] sm:$0xf]
    %v160 = vld [vmem:[#allocation5 + $0x5c] sm:$0xf]
    %v161 = vld [vmem:[#allocation5 + $0x60] sm:$0xf]
    %v162 = vld [vmem:[#allocation5 + $0x64] sm:$0xf]
    %v163 = vld [vmem:[#allocation5 + $0x68] sm:$0xf]
    %v164 = vld [vmem:[#allocation5 + $0x6c] sm:$0xf]
    %v165 = vld [vmem:[#allocation5 + $0x70] sm:$0xf]
    %v166 = vld [vmem:[#allocation5 + $0x74] sm:$0xf]
    %v167 = vld [vmem:[#allocation5 + $0x78] sm:$0xf]
    %v168 = vld [vmem:[#allocation5 + $0x7c] sm:$0xf]
    %v169 = vld [vmem:[#allocation5 + $0x80] sm:$0xf]
    %v170 = vld [vmem:[#allocation5 + $0x84] sm:$0xf]
    %v171 = vld [vmem:[#allocation5 + $0x88] sm:$0xf]
    %v172 = vld [vmem:[#allocation5 + $0x8c] sm:$0xf]
    %v173 = vld [vmem:[#allocation5 + $0x90] sm:$0xf]
    %v174 = vld [vmem:[#allocation5 + $0x94] sm:$0xf]
    %v175 = vld [vmem:[#allocation5 + $0x98] sm:$0xf]
    %v176 = vld [vmem:[#allocation5 + $0x9c] sm:$0xf]
    %v177 = vld [vmem:[#allocation5 + $0xa0] sm:$0xf]
    %v178 = vld [vmem:[#allocation5 + $0xa4] sm:$0xf]
    %v179 = vld [vmem:[#allocation5 + $0xa8] sm:$0xf]
    %v180 = vld [vmem:[#allocation5 + $0xac] sm:$0xf]
    %v181 = vld [vmem:[#allocation5 + $0xb0] sm:$0xf]
    %v182 = vld [vmem:[#allocation5 + $0xb4] sm:$0xf]
    %v183 = vld [vmem:[#allocation5 + $0xb8] sm:$0xf]
    %v184 = vld [vmem:[#allocation5 + $0xbc] sm:$0xf]
    %v185 = vld [vmem:[#allocation5 + $0xc0] sm:$0xf]
    %v186 = vld [vmem:[#allocation5 + $0xc4] sm:$0xf]
    %v187 = vld [vmem:[#allocation5 + $0xc8] sm:$0xf]
    %v188 = vld [vmem:[#allocation5 + $0xcc] sm:$0xf]
    %v189 = vld [vmem:[#allocation5 + $0xd0] sm:$0xf]
    %v190 = vld [vmem:[#allocation5 + $0xd4] sm:$0xf]
    %v191 = vld [vmem:[#allocation5 + $0xd8] sm:$0xf]
    %v192 = vld [vmem:[#allocation5 + $0xdc] sm:$0xf]
    %v193 = vld [vmem:[#allocation5 + $0xe0] sm:$0xf]
    %v194 = vld [vmem:[#allocation5 + $0xe4] sm:$0xf]
    %v195 = vld [vmem:[#allocation5 + $0xe8] sm:$0xf]
    %v196 = vld [vmem:[#allocation5 + $0xec] sm:$0xf]
    %v197 = vld [vmem:[#allocation5 + $0xf0] sm:$0xf]
    %v198 = vld [vmem:[#allocation5 + $0xf4] sm:$0xf]
    %v199 = vld [vmem:[#allocation5 + $0xf8] sm:$0xf]
    %v200 = vld [vmem:[#allocation5 + $0xfc] sm:$0xf]
    %v201 = vld [vmem:[#allocation5 + $0x100] sm:$0xf]
    %v202 = vld [vmem:[#allocation5 + $0x104] sm:$0xf]
    %v203 = vld [vmem:[#allocation5 + $0x108] sm:$0xf]
    %v204 = vld [vmem:[#allocation5 + $0x10c] sm:$0xf]
    %v205 = vld [vmem:[#allocation5 + $0x110] sm:$0xf]
    %v206 = vld [vmem:[#allocation5 + $0x114] sm:$0xf]
    %v207 = vld [vmem:[#allocation5 + $0x118] sm:$0xf]
    %v208 = vld [vmem:[#allocation5 + $0x11c] sm:$0xf]
    %v209 = vld [vmem:[#allocation5 + $0x120] sm:$0xf]
    %v210 = vld [vmem:[#allocation5 + $0x124] sm:$0xf]
    %v211 = vld [vmem:[#allocation5 + $0x128] sm:$0xf]
    %v212 = vld [vmem:[#allocation5 + $0x12c] sm:$0xf]
    %v213 = vld [vmem:[#allocation5 + $0x130] sm:$0xf]
    %v214 = vld [vmem:[#allocation5 + $0x134] sm:$0xf]
    %v215 = vld [vmem:[#allocation5 + $0x138] sm:$0xf]
    %v216 = vld [vmem:[#allocation5 + $0x13c] sm:$0xf]
    %v217 = vld [vmem:[#allocation5 + $0x140] sm:$0xf]
    %v218 = vld [vmem:[#allocation5 + $0x144] sm:$0xf]
    %v219 = vld [vmem:[#allocation5 + $0x148] sm:$0xf]
    %v220 = vld [vmem:[#allocation5 + $0x14c] sm:$0xf]
    %v221 = vld [vmem:[#allocation5 + $0x150] sm:$0xf]
    %v222 = vld [vmem:[#allocation5 + $0x154] sm:$0xf]
    %v223 = vld [vmem:[#allocation5 + $0x158] sm:$0xf]
    %v224 = vld [vmem:[#allocation5 + $0x15c] sm:$0xf]
    %v225 = vld [vmem:[#allocation5 + $0x160] sm:$0xf]
    %v226 = vld [vmem:[#allocation5 + $0x164] sm:$0xf]
    %v227 = vld [vmem:[#allocation5 + $0x168] sm:$0xf]
    %v228 = vld [vmem:[#allocation5 + $0x16c] sm:$0xf]
    %v229 = vld [vmem:[#allocation5 + $0x170] sm:$0xf]
    %v230 = vld [vmem:[#allocation5 + $0x174] sm:$0xf]
    %v231 = vld [vmem:[#allocation5 + $0x178] sm:$0xf]
    %v232 = vld [vmem:[#allocation5 + $0x17c] sm:$0xf]
    %v329 = vunpack.c.l.b16 %v41
    %v330 = vunpack.c.h.b16 %v41
    %v331 = vunpack.c.l.b16 %v42
    %v332 = vunpack.c.h.b16 %v42
    %v333 = vunpack.c.l.b16 %v43
    %v334 = vunpack.c.h.b16 %v43
    %v335 = vunpack.c.l.b16 %v44
    %v336 = vunpack.c.h.b16 %v44
    %v337 = vunpack.c.l.b16 %v45
    %v338 = vunpack.c.h.b16 %v45
    %v339 = vunpack.c.l.b16 %v46
    %v340 = vunpack.c.h.b16 %v46
    %v341 = vunpack.c.l.b16 %v47
    %v342 = vunpack.c.h.b16 %v47
    %v343 = vunpack.c.l.b16 %v48
    %v344 = vunpack.c.h.b16 %v48
    %v345 = vunpack.c.l.b16 %v49
    %v346 = vunpack.c.h.b16 %v49
    %v347 = vunpack.c.l.b16 %v50
    %v348 = vunpack.c.h.b16 %v50
    %v349 = vunpack.c.l.b16 %v51
    %v350 = vunpack.c.h.b16 %v51
    %v351 = vunpack.c.l.b16 %v52
    %v352 = vunpack.c.h.b16 %v52
    %v353 = vunpack.c.l.b16 %v53
    %v354 = vunpack.c.h.b16 %v53
    %v355 = vunpack.c.l.b16 %v54
    %v356 = vunpack.c.h.b16 %v54
    %v357 = vunpack.c.l.b16 %v55
    %v358 = vunpack.c.h.b16 %v55
    %v359 = vunpack.c.l.b16 %v56
    %v360 = vunpack.c.h.b16 %v56
    %v361 = vunpack.c.l.b16 %v57
    %v362 = vunpack.c.h.b16 %v57
    %v363 = vunpack.c.l.b16 %v58
    %v364 = vunpack.c.h.b16 %v58
    %v365 = vunpack.c.l.b16 %v59
    %v366 = vunpack.c.h.b16 %v59
    %v367 = vunpack.c.l.b16 %v60
    %v368 = vunpack.c.h.b16 %v60
    %v369 = vunpack.c.l.b16 %v61
    %v370 = vunpack.c.h.b16 %v61
    %v371 = vunpack.c.l.b16 %v62
    %v372 = vunpack.c.h.b16 %v62
    %v373 = vunpack.c.l.b16 %v63
    %v374 = vunpack.c.h.b16 %v63
    %v375 = vunpack.c.l.b16 %v64
    %v376 = vunpack.c.h.b16 %v64
    %v377 = vunpack.c.l.b16 %v65
    %v378 = vunpack.c.h.b16 %v65
    %v379 = vunpack.c.l.b16 %v66
    %v380 = vunpack.c.h.b16 %v66
    %v381 = vunpack.c.l.b16 %v67
    %v382 = vunpack.c.h.b16 %v67
    %v383 = vunpack.c.l.b16 %v68
    %v384 = vunpack.c.h.b16 %v68
    %v385 = vunpack.c.l.b16 %v69
    %v386 = vunpack.c.h.b16 %v69
    %v387 = vunpack.c.l.b16 %v70
    %v388 = vunpack.c.h.b16 %v70
    %v389 = vunpack.c.l.b16 %v71
    %v390 = vunpack.c.h.b16 %v71
    %v391 = vunpack.c.l.b16 %v72
    %v392 = vunpack.c.h.b16 %v72
    %v393 = vunpack.c.l.b16 %v73
    %v394 = vunpack.c.h.b16 %v73
    %v395 = vunpack.c.l.b16 %v74
    %v396 = vunpack.c.h.b16 %v74
    %v397 = vunpack.c.l.b16 %v75
    %v398 = vunpack.c.h.b16 %v75
    %v399 = vunpack.c.l.b16 %v76
    %v400 = vunpack.c.h.b16 %v76
    %v401 = vunpack.c.l.b16 %v77
    %v402 = vunpack.c.h.b16 %v77
    %v403 = vunpack.c.l.b16 %v78
    %v404 = vunpack.c.h.b16 %v78
    %v405 = vunpack.c.l.b16 %v79
    %v406 = vunpack.c.h.b16 %v79
    %v407 = vunpack.c.l.b16 %v80
    %v408 = vunpack.c.h.b16 %v80
    %v409 = vunpack.c.l.b16 %v81
    %v410 = vunpack.c.h.b16 %v81
    %v411 = vunpack.c.l.b16 %v82
    %v412 = vunpack.c.h.b16 %v82
    %v413 = vunpack.c.l.b16 %v83
    %v414 = vunpack.c.h.b16 %v83
    %v415 = vunpack.c.l.b16 %v84
    %v416 = vunpack.c.h.b16 %v84
    %v417 = vunpack.c.l.b16 %v85
    %v418 = vunpack.c.h.b16 %v85
    %v419 = vunpack.c.l.b16 %v86
    %v420 = vunpack.c.h.b16 %v86
    %v421 = vunpack.c.l.b16 %v87
    %v422 = vunpack.c.h.b16 %v87
    %v423 = vunpack.c.l.b16 %v88
    %v424 = vunpack.c.h.b16 %v88
    %v425 = vunpack.c.l.b16 %v89
    %v426 = vunpack.c.h.b16 %v89
    %v427 = vunpack.c.l.b16 %v90
    %v428 = vunpack.c.h.b16 %v90
    %v429 = vunpack.c.l.b16 %v91
    %v430 = vunpack.c.h.b16 %v91
    %v431 = vunpack.c.l.b16 %v92
    %v432 = vunpack.c.h.b16 %v92
    %v433 = vunpack.c.l.b16 %v93
    %v434 = vunpack.c.h.b16 %v93
    %v435 = vunpack.c.l.b16 %v94
    %v436 = vunpack.c.h.b16 %v94
    %v437 = vunpack.c.l.b16 %v95
    %v438 = vunpack.c.h.b16 %v95
    %v439 = vunpack.c.l.b16 %v96
    %v440 = vunpack.c.h.b16 %v96
    %v441 = vunpack.c.l.b16 %v97
    %v442 = vunpack.c.h.b16 %v97
    %v443 = vunpack.c.l.b16 %v98
    %v444 = vunpack.c.h.b16 %v98
    %v445 = vunpack.c.l.b16 %v99
    %v446 = vunpack.c.h.b16 %v99
    %v447 = vunpack.c.l.b16 %v100
    %v448 = vunpack.c.h.b16 %v100
    %v449 = vunpack.c.l.b16 %v101
    %v450 = vunpack.c.h.b16 %v101
    %v451 = vunpack.c.l.b16 %v102
    %v452 = vunpack.c.h.b16 %v102
    %v453 = vunpack.c.l.b16 %v103
    %v454 = vunpack.c.h.b16 %v103
    %v455 = vunpack.c.l.b16 %v104
    %v456 = vunpack.c.h.b16 %v104
    %v457 = vunpack.c.l.b16 %v105
    %v458 = vunpack.c.h.b16 %v105
    %v459 = vunpack.c.l.b16 %v106
    %v460 = vunpack.c.h.b16 %v106
    %v461 = vunpack.c.l.b16 %v107
    %v462 = vunpack.c.h.b16 %v107
    %v463 = vunpack.c.l.b16 %v108
    %v464 = vunpack.c.h.b16 %v108
    %v465 = vunpack.c.l.b16 %v109
    %v466 = vunpack.c.h.b16 %v109
    %v467 = vunpack.c.l.b16 %v110
    %v468 = vunpack.c.h.b16 %v110
    %v469 = vunpack.c.l.b16 %v111
    %v470 = vunpack.c.h.b16 %v111
    %v471 = vunpack.c.l.b16 %v112
    %v472 = vunpack.c.h.b16 %v112
    %v473 = vunpack.c.l.b16 %v113
    %v474 = vunpack.c.h.b16 %v113
    %v475 = vunpack.c.l.b16 %v114
    %v476 = vunpack.c.h.b16 %v114
    %v477 = vunpack.c.l.b16 %v115
    %v478 = vunpack.c.h.b16 %v115
    %v479 = vunpack.c.l.b16 %v116
    %v480 = vunpack.c.h.b16 %v116
    %v481 = vunpack.c.l.b16 %v117
    %v482 = vunpack.c.h.b16 %v117
    %v483 = vunpack.c.l.b16 %v118
    %v484 = vunpack.c.h.b16 %v118
    %v485 = vunpack.c.l.b16 %v119
    %v486 = vunpack.c.h.b16 %v119
    %v487 = vunpack.c.l.b16 %v120
    %v488 = vunpack.c.h.b16 %v120
    %v489 = vunpack.c.l.b16 %v121
    %v490 = vunpack.c.h.b16 %v121
    %v491 = vunpack.c.l.b16 %v122
    %v492 = vunpack.c.h.b16 %v122
    %v493 = vunpack.c.l.b16 %v123
    %v494 = vunpack.c.h.b16 %v123
    %v495 = vunpack.c.l.b16 %v124
    %v496 = vunpack.c.h.b16 %v124
    %v497 = vunpack.c.l.b16 %v125
    %v498 = vunpack.c.h.b16 %v125
    %v499 = vunpack.c.l.b16 %v126
    %v500 = vunpack.c.h.b16 %v126
    %v501 = vunpack.c.l.b16 %v127
    %v502 = vunpack.c.h.b16 %v127
    %v503 = vunpack.c.l.b16 %v128
    %v504 = vunpack.c.h.b16 %v128
    %v505 = vunpack.c.l.b16 %v129
    %v506 = vunpack.c.h.b16 %v129
    %v507 = vunpack.c.l.b16 %v130
    %v508 = vunpack.c.h.b16 %v130
    %v509 = vunpack.c.l.b16 %v131
    %v510 = vunpack.c.h.b16 %v131
    %v511 = vunpack.c.l.b16 %v132
    %v512 = vunpack.c.h.b16 %v132
    %v513 = vunpack.c.l.b16 %v133
    %v514 = vunpack.c.h.b16 %v133
    %v515 = vunpack.c.l.b16 %v134
    %v516 = vunpack.c.h.b16 %v134
    %v517 = vunpack.c.l.b16 %v135
    %v518 = vunpack.c.h.b16 %v135
    %v519 = vunpack.c.l.b16 %v136
    %v520 = vunpack.c.h.b16 %v136
    %v521 = vpack.c.b16 %v335, %v329
    %v522 = vpack.c.b16 %v336, %v330
    %v523 = vpack.c.b16 %v337, %v331
    %v524 = vpack.c.b16 %v338, %v332
    %v525 = vpack.c.b16 %v339, %v333
    %v526 = vpack.c.b16 %v340, %v334
    %v527 = vpack.c.b16 %v347, %v341
    %v528 = vpack.c.b16 %v348, %v342
    %v529 = vpack.c.b16 %v349, %v343
    %v530 = vpack.c.b16 %v350, %v344
    %v531 = vpack.c.b16 %v351, %v345
    %v532 = vpack.c.b16 %v352, %v346
    %v533 = vpack.c.b16 %v359, %v353
    %v534 = vpack.c.b16 %v360, %v354
    %v535 = vpack.c.b16 %v361, %v355
    %v536 = vpack.c.b16 %v362, %v356
    %v537 = vpack.c.b16 %v363, %v357
    %v538 = vpack.c.b16 %v364, %v358
    %v539 = vpack.c.b16 %v371, %v365
    %v540 = vpack.c.b16 %v372, %v366
    %v541 = vpack.c.b16 %v373, %v367
    %v542 = vpack.c.b16 %v374, %v368
    %v543 = vpack.c.b16 %v375, %v369
    %v544 = vpack.c.b16 %v376, %v370
    %v545 = vpack.c.b16 %v383, %v377
    %v546 = vpack.c.b16 %v384, %v378
    %v547 = vpack.c.b16 %v385, %v379
    %v548 = vpack.c.b16 %v386, %v380
    %v549 = vpack.c.b16 %v387, %v381
    %v550 = vpack.c.b16 %v388, %v382
    %v551 = vpack.c.b16 %v395, %v389
    %v552 = vpack.c.b16 %v396, %v390
    %v553 = vpack.c.b16 %v397, %v391
    %v554 = vpack.c.b16 %v398, %v392
    %v555 = vpack.c.b16 %v399, %v393
    %v556 = vpack.c.b16 %v400, %v394
    %v557 = vpack.c.b16 %v407, %v401
    %v558 = vpack.c.b16 %v408, %v402
    %v559 = vpack.c.b16 %v409, %v403
    %v560 = vpack.c.b16 %v410, %v404
    %v561 = vpack.c.b16 %v411, %v405
    %v562 = vpack.c.b16 %v412, %v406
    %v563 = vpack.c.b16 %v419, %v413
    %v564 = vpack.c.b16 %v420, %v414
    %v565 = vpack.c.b16 %v421, %v415
    %v566 = vpack.c.b16 %v422, %v416
    %v567 = vpack.c.b16 %v423, %v417
    %v568 = vpack.c.b16 %v424, %v418
    %v569 = vpack.c.b16 %v431, %v425
    %v570 = vpack.c.b16 %v432, %v426
    %v571 = vpack.c.b16 %v433, %v427
    %v572 = vpack.c.b16 %v434, %v428
    %v573 = vpack.c.b16 %v435, %v429
    %v574 = vpack.c.b16 %v436, %v430
    %v575 = vpack.c.b16 %v443, %v437
    %v576 = vpack.c.b16 %v444, %v438
    %v577 = vpack.c.b16 %v445, %v439
    %v578 = vpack.c.b16 %v446, %v440
    %v579 = vpack.c.b16 %v447, %v441
    %v580 = vpack.c.b16 %v448, %v442
    %v581 = vpack.c.b16 %v455, %v449
    %v582 = vpack.c.b16 %v456, %v450
    %v583 = vpack.c.b16 %v457, %v451
    %v584 = vpack.c.b16 %v458, %v452
    %v585 = vpack.c.b16 %v459, %v453
    %v586 = vpack.c.b16 %v460, %v454
    %v587 = vpack.c.b16 %v467, %v461
    %v588 = vpack.c.b16 %v468, %v462
    %v589 = vpack.c.b16 %v469, %v463
    %v590 = vpack.c.b16 %v470, %v464
    %v591 = vpack.c.b16 %v471, %v465
    %v592 = vpack.c.b16 %v472, %v466
    %v593 = vpack.c.b16 %v479, %v473
    %v594 = vpack.c.b16 %v480, %v474
    %v595 = vpack.c.b16 %v481, %v475
    %v596 = vpack.c.b16 %v482, %v476
    %v597 = vpack.c.b16 %v483, %v477
    %v598 = vpack.c.b16 %v484, %v478
    %v599 = vpack.c.b16 %v491, %v485
    %v600 = vpack.c.b16 %v492, %v486
    %v601 = vpack.c.b16 %v493, %v487
    %v602 = vpack.c.b16 %v494, %v488
    %v603 = vpack.c.b16 %v495, %v489
    %v604 = vpack.c.b16 %v496, %v490
    %v605 = vpack.c.b16 %v503, %v497
    %v606 = vpack.c.b16 %v504, %v498
    %v607 = vpack.c.b16 %v505, %v499
    %v608 = vpack.c.b16 %v506, %v500
    %v609 = vpack.c.b16 %v507, %v501
    %v610 = vpack.c.b16 %v508, %v502
    %v611 = vpack.c.b16 %v515, %v509
    %v612 = vpack.c.b16 %v516, %v510
    %v613 = vpack.c.b16 %v517, %v511
    %v614 = vpack.c.b16 %v518, %v512
    %v615 = vpack.c.b16 %v519, %v513
    %v616 = vpack.c.b16 %v520, %v514
    %v809 = vunpack.c.l.b16 %v137
    %v810 = vunpack.c.l.b16 %v138
    %v811 = vunpack.c.l.b16 %v139
    %v812 = vunpack.c.l.b16 %v140
    %v813 = vunpack.c.l.b16 %v141
    %v814 = vunpack.c.l.b16 %v142
    %v815 = vunpack.c.l.b16 %v143
    %v816 = vunpack.c.l.b16 %v144
    %v817 = vunpack.c.l.b16 %v145
    %v818 = vunpack.c.l.b16 %v146
    %v819 = vunpack.c.l.b16 %v147
    %v820 = vunpack.c.l.b16 %v148
    %v821 = vunpack.c.l.b16 %v149
    %v822 = vunpack.c.l.b16 %v150
    %v823 = vunpack.c.l.b16 %v151
    %v824 = vunpack.c.l.b16 %v152
    %v825 = vunpack.c.l.b16 %v153
    %v826 = vunpack.c.l.b16 %v154
    %v827 = vunpack.c.l.b16 %v155
    %v828 = vunpack.c.l.b16 %v156
    %v829 = vunpack.c.l.b16 %v157
    %v830 = vunpack.c.l.b16 %v158
    %v831 = vunpack.c.l.b16 %v159
    %v832 = vunpack.c.l.b16 %v160
    %v833 = vunpack.c.l.b16 %v161
    %v834 = vunpack.c.l.b16 %v162
    %v835 = vunpack.c.l.b16 %v163
    %v836 = vunpack.c.l.b16 %v164
    %v837 = vunpack.c.l.b16 %v165
    %v838 = vunpack.c.l.b16 %v166
    %v839 = vunpack.c.l.b16 %v167
    %v840 = vunpack.c.l.b16 %v168
    %v841 = vunpack.c.l.b16 %v169
    %v842 = vunpack.c.l.b16 %v170
    %v843 = vunpack.c.l.b16 %v171
    %v844 = vunpack.c.l.b16 %v172
    %v845 = vunpack.c.l.b16 %v173
    %v846 = vunpack.c.l.b16 %v174
    %v847 = vunpack.c.l.b16 %v175
    %v848 = vunpack.c.l.b16 %v176
    %v849 = vunpack.c.l.b16 %v177
    %v850 = vunpack.c.l.b16 %v178
    %v851 = vunpack.c.l.b16 %v179
    %v852 = vunpack.c.l.b16 %v180
    %v853 = vunpack.c.l.b16 %v181
    %v854 = vunpack.c.l.b16 %v182
    %v855 = vunpack.c.l.b16 %v183
    %v856 = vunpack.c.l.b16 %v184
    %v857 = vunpack.c.l.b16 %v185
    %v858 = vunpack.c.l.b16 %v186
    %v859 = vunpack.c.l.b16 %v187
    %v860 = vunpack.c.l.b16 %v188
    %v861 = vunpack.c.l.b16 %v189
    %v862 = vunpack.c.l.b16 %v190
    %v863 = vunpack.c.l.b16 %v191
    %v864 = vunpack.c.l.b16 %v192
    %v865 = vunpack.c.l.b16 %v193
    %v866 = vunpack.c.l.b16 %v194
    %v867 = vunpack.c.l.b16 %v195
    %v868 = vunpack.c.l.b16 %v196
    %v869 = vunpack.c.l.b16 %v197
    %v870 = vunpack.c.l.b16 %v198
    %v871 = vunpack.c.l.b16 %v199
    %v872 = vunpack.c.l.b16 %v200
    %v873 = vunpack.c.l.b16 %v201
    %v874 = vunpack.c.l.b16 %v202
    %v875 = vunpack.c.l.b16 %v203
    %v876 = vunpack.c.l.b16 %v204
    %v877 = vunpack.c.l.b16 %v205
    %v878 = vunpack.c.l.b16 %v206
    %v879 = vunpack.c.l.b16 %v207
    %v880 = vunpack.c.l.b16 %v208
    %v881 = vunpack.c.l.b16 %v209
    %v882 = vunpack.c.l.b16 %v210
    %v883 = vunpack.c.l.b16 %v211
    %v884 = vunpack.c.l.b16 %v212
    %v885 = vunpack.c.l.b16 %v213
    %v886 = vunpack.c.l.b16 %v214
    %v887 = vunpack.c.l.b16 %v215
    %v888 = vunpack.c.l.b16 %v216
    %v889 = vunpack.c.l.b16 %v217
    %v890 = vunpack.c.l.b16 %v218
    %v891 = vunpack.c.l.b16 %v219
    %v892 = vunpack.c.l.b16 %v220
    %v893 = vunpack.c.l.b16 %v221
    %v894 = vunpack.c.l.b16 %v222
    %v895 = vunpack.c.l.b16 %v223
    %v896 = vunpack.c.l.b16 %v224
    %v897 = vunpack.c.l.b16 %v225
    %v898 = vunpack.c.l.b16 %v226
    %v899 = vunpack.c.l.b16 %v227
    %v900 = vunpack.c.l.b16 %v228
    %v901 = vunpack.c.l.b16 %v229
    %v902 = vunpack.c.l.b16 %v230
    %v903 = vunpack.c.l.b16 %v231
    %v904 = vunpack.c.l.b16 %v232
    %v905 = vpack.c.b16 %v810, %v809
    %v906 = vpack.c.b16 %v812, %v811
    %v907 = vpack.c.b16 %v814, %v813
    %v908 = vpack.c.b16 %v816, %v815
    %v909 = vpack.c.b16 %v818, %v817
    %v910 = vpack.c.b16 %v820, %v819
    %v911 = vpack.c.b16 %v822, %v821
    %v912 = vpack.c.b16 %v824, %v823
    %v913 = vpack.c.b16 %v826, %v825
    %v914 = vpack.c.b16 %v828, %v827
    %v915 = vpack.c.b16 %v830, %v829
    %v916 = vpack.c.b16 %v832, %v831
    %v917 = vpack.c.b16 %v834, %v833
    %v918 = vpack.c.b16 %v836, %v835
    %v919 = vpack.c.b16 %v838, %v837
    %v920 = vpack.c.b16 %v840, %v839
    %v921 = vpack.c.b16 %v842, %v841
    %v922 = vpack.c.b16 %v844, %v843
    %v923 = vpack.c.b16 %v846, %v845
    %v924 = vpack.c.b16 %v848, %v847
    %v925 = vpack.c.b16 %v850, %v849
    %v926 = vpack.c.b16 %v852, %v851
    %v927 = vpack.c.b16 %v854, %v853
    %v928 = vpack.c.b16 %v856, %v855
    %v929 = vpack.c.b16 %v858, %v857
    %v930 = vpack.c.b16 %v860, %v859
    %v931 = vpack.c.b16 %v862, %v861
    %v932 = vpack.c.b16 %v864, %v863
    %v933 = vpack.c.b16 %v866, %v865
    %v934 = vpack.c.b16 %v868, %v867
    %v935 = vpack.c.b16 %v870, %v869
    %v936 = vpack.c.b16 %v872, %v871
    %v937 = vpack.c.b16 %v874, %v873
    %v938 = vpack.c.b16 %v876, %v875
    %v939 = vpack.c.b16 %v878, %v877
    %v940 = vpack.c.b16 %v880, %v879
    %v941 = vpack.c.b16 %v882, %v881
    %v942 = vpack.c.b16 %v884, %v883
    %v943 = vpack.c.b16 %v886, %v885
    %v944 = vpack.c.b16 %v888, %v887
    %v945 = vpack.c.b16 %v890, %v889
    %v946 = vpack.c.b16 %v892, %v891
    %v947 = vpack.c.b16 %v894, %v893
    %v948 = vpack.c.b16 %v896, %v895
    %v949 = vpack.c.b16 %v898, %v897
    %v950 = vpack.c.b16 %v900, %v899
    %v951 = vpack.c.b16 %v902, %v901
    %v952 = vpack.c.b16 %v904, %v903
    %1001 = vmatprep.subr.bf16.mxu0 0
    %1002 = vmatpush1.bf16.msra.mxu0 %v905
    %1003 = vmatprep.subr.bf16.mxu0 0
    %1004 = vmatpush1.bf16.msra.mxu0 %v906
    %1005 = vmatprep.subr.bf16.mxu0 0
    %1006 = vmatpush1.bf16.msra.mxu0 %v907
    %1007 = vmatprep.subr.bf16.mxu0 0
    %1008 = vmatpush1.bf16.msra.mxu0 %v908
    %1009 = vmatprep.subr.bf16.mxu0 0
    %1010 = vmatpush1.bf16.msra.mxu0 %v909
    %1011 = vmatprep.subr.bf16.mxu0 0
    %1012 = vmatpush1.bf16.msra.mxu0 %v910
    %1013 = vmatprep.subr.bf16.mxu0 0
    %1014 = vmatpush1.bf16.msra.mxu0 %v911
    %1015 = vmatprep.subr.bf16.mxu0 0
    %1016 = vmatpush1.bf16.msra.mxu0 %v912
    %1017 = vmatprep.subr.bf16.mxu0 0
    %1018 = vmatpush1.bf16.msra.mxu0 %v913
    %1019 = vmatprep.subr.bf16.mxu0 0
    %1020 = vmatpush1.bf16.msra.mxu0 %v914
    %1021 = vmatprep.subr.bf16.mxu0 0
    %1022 = vmatpush1.bf16.msra.mxu0 %v915
    %1023 = vmatprep.subr.bf16.mxu0 0
    %1024 = vmatpush1.bf16.msra.mxu0 %v916
    %1025 = vmatprep.subr.bf16.mxu0 0
    %1026 = vmatpush1.bf16.msra.mxu0 %v917
    %1027 = vmatprep.subr.bf16.mxu0 0
    %1028 = vmatpush1.bf16.msra.mxu0 %v918
    %1029 = vmatprep.subr.bf16.mxu0 0
    %1030 = vmatpush1.bf16.msra.mxu0 %v919
    %1031 = vmatprep.subr.bf16.mxu0 0
    %1032 = vmatpush1.bf16.msra.mxu0 %v920
    %1033 = vmatprep.mubr.bf16.mxu0 %v522
    %1034 = vmatmul.mubr.bf16.gmra.mrb[0].mxu0 %v521
    %v1035 = vpop.f32.mrb[0].mxu0
    %v1036 = vadd.f32 0.0, %v1035
    %v1037 = vpop.f32.mrb[0].mxu0
    %v1038 = vpop.f32.mrb[0].mxu0
    %v1039 = vadd.f32 0.0, %v1038
    %v1040 = vpop.f32.mrb[0].mxu0
    %1041 = vmatprep.mubr.bf16.mxu0 %v528
    %1042 = vmatmul.mubr.bf16.gmra.mrb[0].mxu0 %v527
    %v1043 = vpop.f32.mrb[0].mxu0
    %v1044 = vadd.f32 0.0, %v1043
    %v1045 = vpop.f32.mrb[0].mxu0
    %v1046 = vpop.f32.mrb[0].mxu0
    %v1047 = vadd.f32 0.0, %v1046
    %v1048 = vpop.f32.mrb[0].mxu0
    %1049 = vmatprep.mubr.bf16.mxu0 %v534
    %1050 = vmatmul.mubr.bf16.gmra.mrb[0].mxu0 %v533
    %v1051 = vpop.f32.mrb[0].mxu0
    %v1052 = vadd.f32 0.0, %v1051
    %v1053 = vpop.f32.mrb[0].mxu0
    %v1054 = vpop.f32.mrb[0].mxu0
    %v1055 = vadd.f32 0.0, %v1054
    %v1056 = vpop.f32.mrb[0].mxu0
    %1057 = vmatprep.mubr.bf16.mxu0 %v540
    %1058 = vmatmul.mubr.bf16.gmra.mrb[0].mxu0 %v539
    %v1059 = vpop.f32.mrb[0].mxu0
    %v1060 = vadd.f32 0.0, %v1059
    %v1061 = vpop.f32.mrb[0].mxu0
    %v1062 = vpop.f32.mrb[0].mxu0
    %v1063 = vadd.f32 0.0, %v1062
    %v1064 = vpop.f32.mrb[0].mxu0
    %1065 = vmatprep.mubr.bf16.mxu0 %v546
    %1066 = vmatmul.mubr.bf16.gmra.mrb[0].mxu0 %v545
    %v1067 = vpop.f32.mrb[0].mxu0
    %v1068 = vadd.f32 0.0, %v1067
    %v1069 = vpop.f32.mrb[0].mxu0
    %v1070 = vpop.f32.mrb[0].mxu0
    %v1071 = vadd.f32 0.0, %v1070
    %v1072 = vpop.f32.mrb[0].mxu0
    %1073 = vmatprep.mubr.bf16.mxu0 %v552
    %1074 = vmatmul.mubr.bf16.gmra.mrb[0].mxu0 %v551
    %v1075 = vpop.f32.mrb[0].mxu0
    %v1076 = vadd.f32 0.0, %v1075
    %v1077 = vpop.f32.mrb[0].mxu0
    %v1078 = vpop.f32.mrb[0].mxu0
    %v1079 = vadd.f32 0.0, %v1078
    %v1080 = vpop.f32.mrb[0].mxu0
    %1081 = vmatprep.mubr.bf16.mxu0 %v558
    %1082 = vmatmul.mubr.bf16.gmra.mrb[0].mxu0 %v557
    %v1083 = vpop.f32.mrb[0].mxu0
    %v1084 = vadd.f32 0.0, %v1083
    %v1085 = vpop.f32.mrb[0].mxu0
    %v1086 = vpop.f32.mrb[0].mxu0
    %v1087 = vadd.f32 0.0, %v1086
    %v1088 = vpop.f32.mrb[0].mxu0
    %1089 = vmatprep.mubr.bf16.mxu0 %v564
    %1090 = vmatmul.mubr.bf16.gmra.mrb[0].mxu0 %v563
    %v1091 = vpop.f32.mrb[0].mxu0
    %v1092 = vadd.f32 0.0, %v1091
    %v1093 = vpop.f32.mrb[0].mxu0
    %v1094 = vpop.f32.mrb[0].mxu0
    %v1095 = vadd.f32 0.0, %v1094
    %v1096 = vpop.f32.mrb[0].mxu0
    %1097 = vmatprep.mubr.bf16.mxu0 %v570
    %1098 = vmatmul.mubr.bf16.gmra.mrb[0].mxu0 %v569
    %v1099 = vpop.f32.mrb[0].mxu0
    %v1100 = vadd.f32 0.0, %v1099
    %v1101 = vpop.f32.mrb[0].mxu0
    %v1102 = vpop.f32.mrb[0].mxu0
    %v1103 = vadd.f32 0.0, %v1102
    %v1104 = vpop.f32.mrb[0].mxu0
    %1105 = vmatprep.mubr.bf16.mxu0 %v576
    %1106 = vmatmul.mubr.bf16.gmra.mrb[0].mxu0 %v575
    %v1107 = vpop.f32.mrb[0].mxu0
    %v1108 = vadd.f32 0.0, %v1107
    %v1109 = vpop.f32.mrb[0].mxu0
    %v1110 = vpop.f32.mrb[0].mxu0
    %v1111 = vadd.f32 0.0, %v1110
    %v1112 = vpop.f32.mrb[0].mxu0
    %1113 = vmatprep.mubr.bf16.mxu0 %v582
    %1114 = vmatmul.mubr.bf16.gmra.mrb[0].mxu0 %v581
    %v1115 = vpop.f32.mrb[0].mxu0
    %v1116 = vadd.f32 0.0, %v1115
    %v1117 = vpop.f32.mrb[0].mxu0
    %v1118 = vpop.f32.mrb[0].mxu0
    %v1119 = vadd.f32 0.0, %v1118
    %v1120 = vpop.f32.mrb[0].mxu0
    %1121 = vmatprep.mubr.bf16.mxu0 %v588
    %1122 = vmatmul.mubr.bf16.gmra.mrb[0].mxu0 %v587
    %v1123 = vpop.f32.mrb[0].mxu0
    %v1124 = vadd.f32 0.0, %v1123
    %v1125 = vpop.f32.mrb[0].mxu0
    %v1126 = vpop.f32.mrb[0].mxu0
    %v1127 = vadd.f32 0.0, %v1126
    %v1128 = vpop.f32.mrb[0].mxu0
    %1129 = vmatprep.mubr.bf16.mxu0 %v594
    %1130 = vmatmul.mubr.bf16.gmra.mrb[0].mxu0 %v593
    %v1131 = vpop.f32.mrb[0].mxu0
    %v1132 = vadd.f32 0.0, %v1131
    %v1133 = vpop.f32.mrb[0].mxu0
    %v1134 = vpop.f32.mrb[0].mxu0
    %v1135 = vadd.f32 0.0, %v1134
    %v1136 = vpop.f32.mrb[0].mxu0
    %1137 = vmatprep.mubr.bf16.mxu0 %v600
    %1138 = vmatmul.mubr.bf16.gmra.mrb[0].mxu0 %v599
    %v1139 = vpop.f32.mrb[0].mxu0
    %v1140 = vadd.f32 0.0, %v1139
    %v1141 = vpop.f32.mrb[0].mxu0
    %v1142 = vpop.f32.mrb[0].mxu0
    %v1143 = vadd.f32 0.0, %v1142
    %v1144 = vpop.f32.mrb[0].mxu0
    %1145 = vmatprep.mubr.bf16.mxu0 %v606
    %1146 = vmatmul.mubr.bf16.gmra.mrb[0].mxu0 %v605
    %v1147 = vpop.f32.mrb[0].mxu0
    %v1148 = vadd.f32 0.0, %v1147
    %v1149 = vpop.f32.mrb[0].mxu0
    %v1150 = vpop.f32.mrb[0].mxu0
    %v1151 = vadd.f32 0.0, %v1150
    %v1152 = vpop.f32.mrb[0].mxu0
    %1153 = vmatprep.mubr.bf16.mxu0 %v612
    %1154 = vmatmul.mubr.bf16.gmra.mrb[0].mxu0 %v611
    %v1155 = vpop.f32.mrb[0].mxu0
    %v1156 = vadd.f32 0.0, %v1155
    %v1157 = vpop.f32.mrb[0].mxu0
    %v1158 = vpop.f32.mrb[0].mxu0
    %v1159 = vadd.f32 0.0, %v1158
    %v1160 = vpop.f32.mrb[0].mxu0
    %1161 = vdwg.mxu0
    %1162 = vmatprep.subr.bf16.mxu0 0
    %1163 = vmatpush1.bf16.msra.mxu0 %v921
    %1164 = vmatprep.subr.bf16.mxu0 0
    %1165 = vmatpush1.bf16.msra.mxu0 %v922
    %1166 = vmatprep.subr.bf16.mxu0 0
    %1167 = vmatpush1.bf16.msra.mxu0 %v923
    %1168 = vmatprep.subr.bf16.mxu0 0
    %1169 = vmatpush1.bf16.msra.mxu0 %v924
    %1170 = vmatprep.subr.bf16.mxu0 0
    %1171 = vmatpush1.bf16.msra.mxu0 %v925
    %1172 = vmatprep.subr.bf16.mxu0 0
    %1173 = vmatpush1.bf16.msra.mxu0 %v926
    %1174 = vmatprep.subr.bf16.mxu0 0
    %1175 = vmatpush1.bf16.msra.mxu0 %v927
    %1176 = vmatprep.subr.bf16.mxu0 0
    %1177 = vmatpush1.bf16.msra.mxu0 %v928
    %1178 = vmatprep.subr.bf16.mxu0 0
    %1179 = vmatpush1.bf16.msra.mxu0 %v929
    %1180 = vmatprep.subr.bf16.mxu0 0
    %1181 = vmatpush1.bf16.msra.mxu0 %v930
    %1182 = vmatprep.subr.bf16.mxu0 0
    %1183 = vmatpush1.bf16.msra.mxu0 %v931
    %1184 = vmatprep.subr.bf16.mxu0 0
    %1185 = vmatpush1.bf16.msra.mxu0 %v932
    %1186 = vmatprep.subr.bf16.mxu0 0
    %1187 = vmatpush1.bf16.msra.mxu0 %v933
    %1188 = vmatprep.subr.bf16.mxu0 0
    %1189 = vmatpush1.bf16.msra.mxu0 %v934
    %1190 = vmatprep.subr.bf16.mxu0 0
    %1191 = vmatpush1.bf16.msra.mxu0 %v935
    %1192 = vmatprep.subr.bf16.mxu0 0
    %1193 = vmatpush1.bf16.msra.mxu0 %v936
    %1194 = vmatprep.mubr.bf16.mxu0 %v524
    %1195 = vmatmul.mubr.bf16.gmra.mrb[0].mxu0 %v523
    %v1196 = vpop.f32.mrb[0].mxu0
    %v1197 = vadd.f32 %v1036, %v1196
    %v1198 = vpop.f32.mrb[0].mxu0
    %v1199 = vpop.f32.mrb[0].mxu0
    %v1200 = vadd.f32 %v1039, %v1199
    %v1201 = vpop.f32.mrb[0].mxu0
    %1202 = vmatprep.mubr.bf16.mxu0 %v530
    %1203 = vmatmul.mubr.bf16.gmra.mrb[0].mxu0 %v529
    %v1204 = vpop.f32.mrb[0].mxu0
    %v1205 = vadd.f32 %v1044, %v1204
    %v1206 = vpop.f32.mrb[0].mxu0
    %v1207 = vpop.f32.mrb[0].mxu0
    %v1208 = vadd.f32 %v1047, %v1207
    %v1209 = vpop.f32.mrb[0].mxu0
    %1210 = vmatprep.mubr.bf16.mxu0 %v536
    %1211 = vmatmul.mubr.bf16.gmra.mrb[0].mxu0 %v535
    %v1212 = vpop.f32.mrb[0].mxu0
    %v1213 = vadd.f32 %v1052, %v1212
    %v1214 = vpop.f32.mrb[0].mxu0
    %v1215 = vpop.f32.mrb[0].mxu0
    %v1216 = vadd.f32 %v1055, %v1215
    %v1217 = vpop.f32.mrb[0].mxu0
    %1218 = vmatprep.mubr.bf16.mxu0 %v542
    %1219 = vmatmul.mubr.bf16.gmra.mrb[0].mxu0 %v541
    %v1220 = vpop.f32.mrb[0].mxu0
    %v1221 = vadd.f32 %v1060, %v1220
    %v1222 = vpop.f32.mrb[0].mxu0
    %v1223 = vpop.f32.mrb[0].mxu0
    %v1224 = vadd.f32 %v1063, %v1223
    %v1225 = vpop.f32.mrb[0].mxu0
    %1226 = vmatprep.mubr.bf16.mxu0 %v548
    %1227 = vmatmul.mubr.bf16.gmra.mrb[0].mxu0 %v547
    %v1228 = vpop.f32.mrb[0].mxu0
    %v1229 = vadd.f32 %v1068, %v1228
    %v1230 = vpop.f32.mrb[0].mxu0
    %v1231 = vpop.f32.mrb[0].mxu0
    %v1232 = vadd.f32 %v1071, %v1231
    %v1233 = vpop.f32.mrb[0].mxu0
    %1234 = vmatprep.mubr.bf16.mxu0 %v554
    %1235 = vmatmul.mubr.bf16.gmra.mrb[0].mxu0 %v553
    %v1236 = vpop.f32.mrb[0].mxu0
    %v1237 = vadd.f32 %v1076, %v1236
    %v1238 = vpop.f32.mrb[0].mxu0
    %v1239 = vpop.f32.mrb[0].mxu0
    %v1240 = vadd.f32 %v1079, %v1239
    %v1241 = vpop.f32.mrb[0].mxu0
    %1242 = vmatprep.mubr.bf16.mxu0 %v560
    %1243 = vmatmul.mubr.bf16.gmra.mrb[0].mxu0 %v559
    %v1244 = vpop.f32.mrb[0].mxu0
    %v1245 = vadd.f32 %v1084, %v1244
    %v1246 = vpop.f32.mrb[0].mxu0
    %v1247 = vpop.f32.mrb[0].mxu0
    %v1248 = vadd.f32 %v1087, %v1247
    %v1249 = vpop.f32.mrb[0].mxu0
    %1250 = vmatprep.mubr.bf16.mxu0 %v566
    %1251 = vmatmul.mubr.bf16.gmra.mrb[0].mxu0 %v565
    %v1252 = vpop.f32.mrb[0].mxu0
    %v1253 = vadd.f32 %v1092, %v1252
    %v1254 = vpop.f32.mrb[0].mxu0
    %v1255 = vpop.f32.mrb[0].mxu0
    %v1256 = vadd.f32 %v1095, %v1255
    %v1257 = vpop.f32.mrb[0].mxu0
    %1258 = vmatprep.mubr.bf16.mxu0 %v572
    %1259 = vmatmul.mubr.bf16.gmra.mrb[0].mxu0 %v571
    %v1260 = vpop.f32.mrb[0].mxu0
    %v1261 = vadd.f32 %v1100, %v1260
    %v1262 = vpop.f32.mrb[0].mxu0
    %v1263 = vpop.f32.mrb[0].mxu0
    %v1264 = vadd.f32 %v1103, %v1263
    %v1265 = vpop.f32.mrb[0].mxu0
    %1266 = vmatprep.mubr.bf16.mxu0 %v578
    %1267 = vmatmul.mubr.bf16.gmra.mrb[0].mxu0 %v577
    %v1268 = vpop.f32.mrb[0].mxu0
    %v1269 = vadd.f32 %v1108, %v1268
    %v1270 = vpop.f32.mrb[0].mxu0
    %v1271 = vpop.f32.mrb[0].mxu0
    %v1272 = vadd.f32 %v1111, %v1271
    %v1273 = vpop.f32.mrb[0].mxu0
    %1274 = vmatprep.mubr.bf16.mxu0 %v584
    %1275 = vmatmul.mubr.bf16.gmra.mrb[0].mxu0 %v583
    %v1276 = vpop.f32.mrb[0].mxu0
    %v1277 = vadd.f32 %v1116, %v1276
    %v1278 = vpop.f32.mrb[0].mxu0
    %v1279 = vpop.f32.mrb[0].mxu0
    %v1280 = vadd.f32 %v1119, %v1279
    %v1281 = vpop.f32.mrb[0].mxu0
    %1282 = vmatprep.mubr.bf16.mxu0 %v590
    %1283 = vmatmul.mubr.bf16.gmra.mrb[0].mxu0 %v589
    %v1284 = vpop.f32.mrb[0].mxu0
    %v1285 = vadd.f32 %v1124, %v1284
    %v1286 = vpop.f32.mrb[0].mxu0
    %v1287 = vpop.f32.mrb[0].mxu0
    %v1288 = vadd.f32 %v1127, %v1287
    %v1289 = vpop.f32.mrb[0].mxu0
    %1290 = vmatprep.mubr.bf16.mxu0 %v596
    %1291 = vmatmul.mubr.bf16.gmra.mrb[0].mxu0 %v595
    %v1292 = vpop.f32.mrb[0].mxu0
    %v1293 = vadd.f32 %v1132, %v1292
    %v1294 = vpop.f32.mrb[0].mxu0
    %v1295 = vpop.f32.mrb[0].mxu0
    %v1296 = vadd.f32 %v1135, %v1295
    %v1297 = vpop.f32.mrb[0].mxu0
    %1298 = vmatprep.mubr.bf16.mxu0 %v602
    %1299 = vmatmul.mubr.bf16.gmra.mrb[0].mxu0 %v601
    %v1300 = vpop.f32.mrb[0].mxu0
    %v1301 = vadd.f32 %v1140, %v1300
    %v1302 = vpop.f32.mrb[0].mxu0
    %v1303 = vpop.f32.mrb[0].mxu0
    %v1304 = vadd.f32 %v1143, %v1303
    %v1305 = vpop.f32.mrb[0].mxu0
    %1306 = vmatprep.mubr.bf16.mxu0 %v608
    %1307 = vmatmul.mubr.bf16.gmra.mrb[0].mxu0 %v607
    %v1308 = vpop.f32.mrb[0].mxu0
    %v1309 = vadd.f32 %v1148, %v1308
    %v1310 = vpop.f32.mrb[0].mxu0
    %v1311 = vpop.f32.mrb[0].mxu0
    %v1312 = vadd.f32 %v1151, %v1311
    %v1313 = vpop.f32.mrb[0].mxu0
    %1314 = vmatprep.mubr.bf16.mxu0 %v614
    %1315 = vmatmul.mubr.bf16.gmra.mrb[0].mxu0 %v613
    %v1316 = vpop.f32.mrb[0].mxu0
    %v1317 = vadd.f32 %v1156, %v1316
    %v1318 = vpop.f32.mrb[0].mxu0
    %v1319 = vpop.f32.mrb[0].mxu0
    %v1320 = vadd.f32 %v1159, %v1319
    %v1321 = vpop.f32.mrb[0].mxu0
    %1322 = vdwg.mxu0
    %1323 = vmatprep.subr.bf16.mxu0 0
    %1324 = vmatpush1.bf16.msra.mxu0 %v937
    %1325 = vmatprep.subr.bf16.mxu0 0
    %1326 = vmatpush1.bf16.msra.mxu0 %v938
    %1327 = vmatprep.subr.bf16.mxu0 0
    %1328 = vmatpush1.bf16.msra.mxu0 %v939
    %1329 = vmatprep.subr.bf16.mxu0 0
    %1330 = vmatpush1.bf16.msra.mxu0 %v940
    %1331 = vmatprep.subr.bf16.mxu0 0
    %1332 = vmatpush1.bf16.msra.mxu0 %v941
    %1333 = vmatprep.subr.bf16.mxu0 0
    %1334 = vmatpush1.bf16.msra.mxu0 %v942
    %1335 = vmatprep.subr.bf16.mxu0 0
    %1336 = vmatpush1.bf16.msra.mxu0 %v943
    %1337 = vmatprep.subr.bf16.mxu0 0
    %1338 = vmatpush1.bf16.msra.mxu0 %v944
    %1339 = vmatprep.subr.bf16.mxu0 0
    %1340 = vmatpush1.bf16.msra.mxu0 %v945
    %1341 = vmatprep.subr.bf16.mxu0 0
    %1342 = vmatpush1.bf16.msra.mxu0 %v946
    %1343 = vmatprep.subr.bf16.mxu0 0
    %1344 = vmatpush1.bf16.msra.mxu0 %v947
    %1345 = vmatprep.subr.bf16.mxu0 0
    %1346 = vmatpush1.bf16.msra.mxu0 %v948
    %1347 = vmatprep.subr.bf16.mxu0 0
    %1348 = vmatpush1.bf16.msra.mxu0 %v949
    %1349 = vmatprep.subr.bf16.mxu0 0
    %1350 = vmatpush1.bf16.msra.mxu0 %v950
    %1351 = vmatprep.subr.bf16.mxu0 0
    %1352 = vmatpush1.bf16.msra.mxu0 %v951
    %1353 = vmatprep.subr.bf16.mxu0 0
    %1354 = vmatpush1.bf16.msra.mxu0 %v952
    %1355 = vmatprep.mubr.bf16.mxu0 %v526
    %1356 = vmatmul.mubr.bf16.gmra.mrb[0].mxu0 %v525
    %v1357 = vpop.f32.mrb[0].mxu0
    %v1358 = vadd.f32 %v1197, %v1357
    %v1359 = vpop.f32.mrb[0].mxu0
    %v1360 = vpop.f32.mrb[0].mxu0
    %v1361 = vadd.f32 %v1200, %v1360
    %v1362 = vpop.f32.mrb[0].mxu0
    %1363 = vmatprep.mubr.bf16.mxu0 %v532
    %1364 = vmatmul.mubr.bf16.gmra.mrb[0].mxu0 %v531
    %v1365 = vpop.f32.mrb[0].mxu0
    %v1366 = vadd.f32 %v1205, %v1365
    %v1367 = vpop.f32.mrb[0].mxu0
    %v1368 = vpop.f32.mrb[0].mxu0
    %v1369 = vadd.f32 %v1208, %v1368
    %v1370 = vpop.f32.mrb[0].mxu0
    %1371 = vmatprep.mubr.bf16.mxu0 %v538
    %1372 = vmatmul.mubr.bf16.gmra.mrb[0].mxu0 %v537
    %v1373 = vpop.f32.mrb[0].mxu0
    %v1374 = vadd.f32 %v1213, %v1373
    %v1375 = vpop.f32.mrb[0].mxu0
    %v1376 = vpop.f32.mrb[0].mxu0
    %v1377 = vadd.f32 %v1216, %v1376
    %v1378 = vpop.f32.mrb[0].mxu0
    %1379 = vmatprep.mubr.bf16.mxu0 %v544
    %1380 = vmatmul.mubr.bf16.gmra.mrb[0].mxu0 %v543
    %v1381 = vpop.f32.mrb[0].mxu0
    %v1382 = vadd.f32 %v1221, %v1381
    %v1383 = vpop.f32.mrb[0].mxu0
    %v1384 = vpop.f32.mrb[0].mxu0
    %v1385 = vadd.f32 %v1224, %v1384
    %v1386 = vpop.f32.mrb[0].mxu0
    %1387 = vmatprep.mubr.bf16.mxu0 %v550
    %1388 = vmatmul.mubr.bf16.gmra.mrb[0].mxu0 %v549
    %v1389 = vpop.f32.mrb[0].mxu0
    %v1390 = vadd.f32 %v1229, %v1389
    %v1391 = vpop.f32.mrb[0].mxu0
    %v1392 = vpop.f32.mrb[0].mxu0
    %v1393 = vadd.f32 %v1232, %v1392
    %v1394 = vpop.f32.mrb[0].mxu0
    %1395 = vmatprep.mubr.bf16.mxu0 %v556
    %1396 = vmatmul.mubr.bf16.gmra.mrb[0].mxu0 %v555
    %v1397 = vpop.f32.mrb[0].mxu0
    %v1398 = vadd.f32 %v1237, %v1397
    %v1399 = vpop.f32.mrb[0].mxu0
    %v1400 = vpop.f32.mrb[0].mxu0
    %v1401 = vadd.f32 %v1240, %v1400
    %v1402 = vpop.f32.mrb[0].mxu0
    %1403 = vmatprep.mubr.bf16.mxu0 %v562
    %1404 = vmatmul.mubr.bf16.gmra.mrb[0].mxu0 %v561
    %v1405 = vpop.f32.mrb[0].mxu0
    %v1406 = vadd.f32 %v1245, %v1405
    %v1407 = vpop.f32.mrb[0].mxu0
    %v1408 = vpop.f32.mrb[0].mxu0
    %v1409 = vadd.f32 %v1248, %v1408
    %v1410 = vpop.f32.mrb[0].mxu0
    %1411 = vmatprep.mubr.bf16.mxu0 %v568
    %1412 = vmatmul.mubr.bf16.gmra.mrb[0].mxu0 %v567
    %v1413 = vpop.f32.mrb[0].mxu0
    %v1414 = vadd.f32 %v1253, %v1413
    %v1415 = vpop.f32.mrb[0].mxu0
    %v1416 = vpop.f32.mrb[0].mxu0
    %v1417 = vadd.f32 %v1256, %v1416
    %v1418 = vpop.f32.mrb[0].mxu0
    %1419 = vmatprep.mubr.bf16.mxu0 %v574
    %1420 = vmatmul.mubr.bf16.gmra.mrb[0].mxu0 %v573
    %v1421 = vpop.f32.mrb[0].mxu0
    %v1422 = vadd.f32 %v1261, %v1421
    %v1423 = vpop.f32.mrb[0].mxu0
    %v1424 = vpop.f32.mrb[0].mxu0
    %v1425 = vadd.f32 %v1264, %v1424
    %v1426 = vpop.f32.mrb[0].mxu0
    %1427 = vmatprep.mubr.bf16.mxu0 %v580
    %1428 = vmatmul.mubr.bf16.gmra.mrb[0].mxu0 %v579
    %v1429 = vpop.f32.mrb[0].mxu0
    %v1430 = vadd.f32 %v1269, %v1429
    %v1431 = vpop.f32.mrb[0].mxu0
    %v1432 = vpop.f32.mrb[0].mxu0
    %v1433 = vadd.f32 %v1272, %v1432
    %v1434 = vpop.f32.mrb[0].mxu0
    %1435 = vmatprep.mubr.bf16.mxu0 %v586
    %1436 = vmatmul.mubr.bf16.gmra.mrb[0].mxu0 %v585
    %v1437 = vpop.f32.mrb[0].mxu0
    %v1438 = vadd.f32 %v1277, %v1437
    %v1439 = vpop.f32.mrb[0].mxu0
    %v1440 = vpop.f32.mrb[0].mxu0
    %v1441 = vadd.f32 %v1280, %v1440
    %v1442 = vpop.f32.mrb[0].mxu0
    %1443 = vmatprep.mubr.bf16.mxu0 %v592
    %1444 = vmatmul.mubr.bf16.gmra.mrb[0].mxu0 %v591
    %v1445 = vpop.f32.mrb[0].mxu0
    %v1446 = vadd.f32 %v1285, %v1445
    %v1447 = vpop.f32.mrb[0].mxu0
    %v1448 = vpop.f32.mrb[0].mxu0
    %v1449 = vadd.f32 %v1288, %v1448
    %v1450 = vpop.f32.mrb[0].mxu0
    %1451 = vmatprep.mubr.bf16.mxu0 %v598
    %1452 = vmatmul.mubr.bf16.gmra.mrb[0].mxu0 %v597
    %v1453 = vpop.f32.mrb[0].mxu0
    %v1454 = vadd.f32 %v1293, %v1453
    %v1455 = vpop.f32.mrb[0].mxu0
    %v1456 = vpop.f32.mrb[0].mxu0
    %v1457 = vadd.f32 %v1296, %v1456
    %v1458 = vpop.f32.mrb[0].mxu0
    %1459 = vmatprep.mubr.bf16.mxu0 %v604
    %1460 = vmatmul.mubr.bf16.gmra.mrb[0].mxu0 %v603
    %v1461 = vpop.f32.mrb[0].mxu0
    %v1462 = vadd.f32 %v1301, %v1461
    %v1463 = vpop.f32.mrb[0].mxu0
    %v1464 = vpop.f32.mrb[0].mxu0
    %v1465 = vadd.f32 %v1304, %v1464
    %v1466 = vpop.f32.mrb[0].mxu0
    %1467 = vmatprep.mubr.bf16.mxu0 %v610
    %1468 = vmatmul.mubr.bf16.gmra.mrb[0].mxu0 %v609
    %v1469 = vpop.f32.mrb[0].mxu0
    %v1470 = vadd.f32 %v1309, %v1469
    %v1471 = vpop.f32.mrb[0].mxu0
    %v1472 = vpop.f32.mrb[0].mxu0
    %v1473 = vadd.f32 %v1312, %v1472
    %v1474 = vpop.f32.mrb[0].mxu0
    %1475 = vmatprep.mubr.bf16.mxu0 %v616
    %1476 = vmatmul.mubr.bf16.gmra.mrb[0].mxu0 %v615
    %v1477 = vpop.f32.mrb[0].mxu0
    %v1478 = vadd.f32 %v1317, %v1477
    %v1479 = vpop.f32.mrb[0].mxu0
    %v1480 = vpop.f32.mrb[0].mxu0
    %v1481 = vadd.f32 %v1320, %v1480
    %v1482 = vpop.f32.mrb[0].mxu0
    %1483 = vdwg.mxu0
    %v1484 = vpack.c.bf16 %v1361, %v1358
    %v1485 = vpack.c.bf16 %v1369, %v1366
    %v1486 = vpack.c.bf16 %v1377, %v1374
    %v1487 = vpack.c.bf16 %v1385, %v1382
    %v1488 = vpack.c.bf16 %v1393, %v1390
    %v1489 = vpack.c.bf16 %v1401, %v1398
    %v1490 = vpack.c.bf16 %v1409, %v1406
    %v1491 = vpack.c.bf16 %v1417, %v1414
    %v1492 = vpack.c.bf16 %v1425, %v1422
    %v1493 = vpack.c.bf16 %v1433, %v1430
    %v1494 = vpack.c.bf16 %v1441, %v1438
    %v1495 = vpack.c.bf16 %v1449, %v1446
    %v1496 = vpack.c.bf16 %v1457, %v1454
    %v1497 = vpack.c.bf16 %v1465, %v1462
    %v1498 = vpack.c.bf16 %v1473, %v1470
    %v1499 = vpack.c.bf16 %v1481, %v1478
    %v1516 = vunpack.c.l.b16 %v1484
    %v1517 = vunpack.c.h.b16 %v1484
    %v1518 = vunpack.c.l.b16 %v1485
    %v1519 = vunpack.c.h.b16 %v1485
    %v1520 = vunpack.c.l.b16 %v1486
    %v1521 = vunpack.c.h.b16 %v1486
    %v1522 = vunpack.c.l.b16 %v1487
    %v1523 = vunpack.c.h.b16 %v1487
    %v1524 = vunpack.c.l.b16 %v1488
    %v1525 = vunpack.c.h.b16 %v1488
    %v1526 = vunpack.c.l.b16 %v1489
    %v1527 = vunpack.c.h.b16 %v1489
    %v1528 = vunpack.c.l.b16 %v1490
    %v1529 = vunpack.c.h.b16 %v1490
    %v1530 = vunpack.c.l.b16 %v1491
    %v1531 = vunpack.c.h.b16 %v1491
    %v1532 = vunpack.c.l.b16 %v1492
    %v1533 = vunpack.c.h.b16 %v1492
    %v1534 = vunpack.c.l.b16 %v1493
    %v1535 = vunpack.c.h.b16 %v1493
    %v1536 = vunpack.c.l.b16 %v1494
    %v1537 = vunpack.c.h.b16 %v1494
    %v1538 = vunpack.c.l.b16 %v1495
    %v1539 = vunpack.c.h.b16 %v1495
    %v1540 = vunpack.c.l.b16 %v1496
    %v1541 = vunpack.c.h.b16 %v1496
    %v1542 = vunpack.c.l.b16 %v1497
    %v1543 = vunpack.c.h.b16 %v1497
    %v1544 = vunpack.c.l.b16 %v1498
    %v1545 = vunpack.c.h.b16 %v1498
    %v1546 = vunpack.c.l.b16 %v1499
    %v1547 = vunpack.c.h.b16 %v1499
    %v1548 = vpack.c.b16 %v1516, %v1516
    %v1549 = vpack.c.b16 %v1517, %v1517
    %v1550 = vpack.c.b16 %v1518, %v1518
    %v1551 = vpack.c.b16 %v1519, %v1519
    %v1552 = vpack.c.b16 %v1520, %v1520
    %v1553 = vpack.c.b16 %v1521, %v1521
    %v1554 = vpack.c.b16 %v1522, %v1522
    %v1555 = vpack.c.b16 %v1523, %v1523
    %v1556 = vpack.c.b16 %v1524, %v1524
    %v1557 = vpack.c.b16 %v1525, %v1525
    %v1558 = vpack.c.b16 %v1526, %v1526
    %v1559 = vpack.c.b16 %v1527, %v1527
    %v1560 = vpack.c.b16 %v1528, %v1528
    %v1561 = vpack.c.b16 %v1529, %v1529
    %v1562 = vpack.c.b16 %v1530, %v1530
    %v1563 = vpack.c.b16 %v1531, %v1531
    %v1564 = vpack.c.b16 %v1532, %v1532
    %v1565 = vpack.c.b16 %v1533, %v1533
    %v1566 = vpack.c.b16 %v1534, %v1534
    %v1567 = vpack.c.b16 %v1535, %v1535
    %v1568 = vpack.c.b16 %v1536, %v1536
    %v1569 = vpack.c.b16 %v1537, %v1537
    %v1570 = vpack.c.b16 %v1538, %v1538
    %v1571 = vpack.c.b16 %v1539, %v1539
    %v1572 = vpack.c.b16 %v1540, %v1540
    %v1573 = vpack.c.b16 %v1541, %v1541
    %v1574 = vpack.c.b16 %v1542, %v1542
    %v1575 = vpack.c.b16 %v1543, %v1543
    %v1576 = vpack.c.b16 %v1544, %v1544
    %v1577 = vpack.c.b16 %v1545, %v1545
    %v1578 = vpack.c.b16 %v1546, %v1546
    %v1579 = vpack.c.b16 %v1547, %v1547
    %1612 = vst [vmem:[#allocation7] sm:$0xf] %v1548
    %1613 = vst [vmem:[#allocation7 + $0x4] sm:$0xf] %v1549
    %1614 = vst [vmem:[#allocation7 + $0x8] sm:$0xf] %v1550
    %1615 = vst [vmem:[#allocation7 + $0xc] sm:$0xf] %v1551
    %1616 = vst [vmem:[#allocation7 + $0x10] sm:$0xf] %v1552
    %1617 = vst [vmem:[#allocation7 + $0x14] sm:$0xf] %v1553
    %1618 = vst [vmem:[#allocation7 + $0x18] sm:$0xf] %v1554
    %1619 = vst [vmem:[#allocation7 + $0x1c] sm:$0xf] %v1555
    %1620 = vst [vmem:[#allocation7 + $0x20] sm:$0xf] %v1556
    %1621 = vst [vmem:[#allocation7 + $0x24] sm:$0xf] %v1557
    %1622 = vst [vmem:[#allocation7 + $0x28] sm:$0xf] %v1558
    %1623 = vst [vmem:[#allocation7 + $0x2c] sm:$0xf] %v1559
    %1624 = vst [vmem:[#allocation7 + $0x30] sm:$0xf] %v1560
    %1625 = vst [vmem:[#allocation7 + $0x34] sm:$0xf] %v1561
    %1626 = vst [vmem:[#allocation7 + $0x38] sm:$0xf] %v1562
    %1627 = vst [vmem:[#allocation7 + $0x3c] sm:$0xf] %v1563
    %1628 = vst [vmem:[#allocation7 + $0x40] sm:$0xf] %v1564
    %1629 = vst [vmem:[#allocation7 + $0x44] sm:$0xf] %v1565
    %1630 = vst [vmem:[#allocation7 + $0x48] sm:$0xf] %v1566
    %1631 = vst [vmem:[#allocation7 + $0x4c] sm:$0xf] %v1567
    %1632 = vst [vmem:[#allocation7 + $0x50] sm:$0xf] %v1568
    %1633 = vst [vmem:[#allocation7 + $0x54] sm:$0xf] %v1569
    %1634 = vst [vmem:[#allocation7 + $0x58] sm:$0xf] %v1570
    %1635 = vst [vmem:[#allocation7 + $0x5c] sm:$0xf] %v1571
    %1636 = vst [vmem:[#allocation7 + $0x60] sm:$0xf] %v1572
    %1637 = vst [vmem:[#allocation7 + $0x64] sm:$0xf] %v1573
    %1638 = vst [vmem:[#allocation7 + $0x68] sm:$0xf] %v1574
    %1639 = vst [vmem:[#allocation7 + $0x6c] sm:$0xf] %v1575
    %1640 = vst [vmem:[#allocation7 + $0x70] sm:$0xf] %v1576
    %1641 = vst [vmem:[#allocation7 + $0x74] sm:$0xf] %v1577
    %1642 = vst [vmem:[#allocation7 + $0x78] sm:$0xf] %v1578
    %1643 = vst [vmem:[#allocation7 + $0x7c] sm:$0xf] %v1579
    // Predicated region
    $region18: #{tpu_custom_call.1} parent=1 // pred_check
      _
    $region19: #{tpu_custom_call.1} parent=1 // pred_check_branch
      %1645 = sbr.rel (0) target = $region21
    $region20: #{tpu_custom_call.1} parent=1 // pred_region
      %s1647 = ssub.s32 2048, 2048
      %1648 = vsyncadd [#allocation4], %s1647
      %s1649 = sshll.u32 [#allocation7], 4
      %s1650 = int_to_ptr.vmem [resolvable:$true] %s1649
      %1655 = dma.vmem_to_hbm [thread:$0]  %s1650, 2048, %s2, [#allocation4], 64, 64, 4
    $region21: #{tpu_custom_call.1} parent=1 // pred_fallthru
      _
    // Predicated region
    $region22: #{tpu_custom_call.1} parent=1 // pred_check
      _
    $region23: #{tpu_custom_call.1} parent=1 // pred_check_branch
      %1657 = sbr.rel (0) target = $region25
    $region24: #{tpu_custom_call.1} parent=1 // pred_region
      %1658 = dma.done [#allocation4], 2048
    $region25: #{tpu_custom_call.1} parent=1 // pred_fallthru
      _
    %1659 = vsyncpa [#allocation3], 1
    %1660 = vsyncpa [#allocation6], 1
    %1661 = vsyncpa [#allocation4], 1

</llo_original>
